<compile_context>
chip_gen: v7x
topology: tpu7x:2x2x1
jax: 0.10.0
libtpu: 0.0.40
codegen_flags: <defaults>
</compile_context>

<pallas_src>
import functools

import jax
import jax.numpy as jnp
from jax.experimental import pallas as pl
from jax.experimental.pallas import tpu as pltpu

EPS_GIN = 0.0     # GINConv default eps (train_eps=False)
BN_EPS = 1e-5     # BatchNorm1d default eps
_VMEM_LIMIT = 32 * 1024 * 1024   # safe on v5e/v6e (128 MiB) and v7x (64 MiB)


def _round_up(v, m):
    return (v + m - 1) // m * m


def _choose_node_tiling(n):
    """Returns (n_pad, tm, tk) with n_pad % tm == 0 and n_pad % tk == 0."""
    if n <= 128:
        return 128, 128, 128
    if n <= 256:
        return 256, 256, 256
    # Large graphs: 256x512 bf16 A tiles (256 KiB) keep double-buffered VMEM
    # usage ~2 MiB, well under the 32 MiB scoped limit even on v7x.
    return _round_up(n, 512), 256, 512


# --------------------------------------------------------------------------
# Kernel 1: agg = (1+eps)*x_i + sum_k A[i,k] @ x_k ;  h = agg @ W + b
# Grid: (node tiles M, neighbor tiles K), K last / "arbitrary".
# --------------------------------------------------------------------------
def _gin_linear_kernel(x_self_ref, a_ref, x_nbr_ref, w_ref, b_ref, h_ref, acc_ref):
    k = pl.program_id(1)

    @pl.when(k == 0)
    def _():
        acc_ref[...] = (1.0 + EPS_GIN) * x_self_ref[...]

    # Adjacency tile is stored bf16 (halves the dominant N^2 HBM stream; small
    # integer edge counts are exact in bf16); upcast for an exact f32 matmul.
    acc_ref[...] += jnp.dot(a_ref[...].astype(jnp.float32), x_nbr_ref[...],
                            preferred_element_type=jnp.float32)

    @pl.when(k == pl.num_programs(1) - 1)
    def _():
        h_ref[...] = jnp.dot(acc_ref[...], w_ref[...],
                             preferred_element_type=jnp.float32) + b_ref[...]


# --------------------------------------------------------------------------
# Kernel 2: BatchNorm pass 1 — per-feature sum and sum of squares over the
# real (unpadded) node rows.  Resident [1, D] accumulators across the grid.
# --------------------------------------------------------------------------
def _bn_stats_kernel(h_ref, sum_ref, sq_ref, *, tm, n_valid):
    i = pl.program_id(0)

    @pl.when(i == 0)
    def _():
        sum_ref[...] = jnp.zeros_like(sum_ref)
        sq_ref[...] = jnp.zeros_like(sq_ref)

    rows = i * tm + jax.lax.broadcasted_iota(jnp.int32, (tm, 1), 0)
    mask = (rows < n_valid).astype(jnp.float32)            # zero out pad rows
    hv = h_ref[...] * mask
    sum_ref[...] += jnp.sum(hv, axis=0, keepdims=True)
    sq_ref[...] += jnp.sum(hv * hv, axis=0, keepdims=True)


# --------------------------------------------------------------------------
# Kernel 3: BatchNorm pass 2 — y = h * scale + shift (pre-folded affine).
# --------------------------------------------------------------------------
def _bn_apply_kernel(h_ref, scale_ref, shift_ref, o_ref):
    o_ref[...] = h_ref[...] * scale_ref[...] + shift_ref[...]


def gin_1_bn_forward(x, edge_index, w, b, gamma, beta):
    """x: [N, D_in] f32, edge_index: [2, E] int32, w: [D_in, D_out] (W^T layout),
    b/gamma/beta: [1, D_out]."""
    n, d_in = x.shape
    d_out = w.shape[1]

    n_pad, tm, tk = _choose_node_tiling(n)
    d_in_pad = _round_up(d_in, 128)      # lane-dense MXU / loads
    d_out_pad = _round_up(d_out, 128)    # lane-dense stores

    # ---- glue (layout plumbing) in plain JAX -------------------------------
    x_pad = jnp.zeros((n_pad, d_in_pad), jnp.float32).at[:n, :d_in].set(x)
    src, dst = edge_index[0], edge_index[1]
    # A[i, j] = #edges j -> i (PyG aggregates at edge_index[1]); bf16 storage.
    adj = (jnp.zeros((n_pad, n_pad), jnp.float32)
           .at[dst, src].add(1.0)).astype(jnp.bfloat16)
    w_pad = jnp.zeros((d_in_pad, d_out_pad), jnp.float32).at[:d_in, :d_out].set(w)
    b_pad = jnp.zeros((1, d_out_pad), jnp.float32).at[:, :d_out].set(b.reshape(1, -1))
    gamma_pad = jnp.zeros((1, d_out_pad), jnp.float32).at[:, :d_out].set(gamma.reshape(1, -1))
    beta_pad = jnp.zeros((1, d_out_pad), jnp.float32).at[:, :d_out].set(beta.reshape(1, -1))

    m_tiles = n_pad // tm
    k_tiles = n_pad // tk

    cost = pl.CostEstimate(
        flops=2 * n_pad * n_pad * d_in_pad + 2 * n_pad * d_in_pad * d_out_pad,
        transcendentals=0,
        bytes_accessed=(2 * n_pad * n_pad                    # bf16 adjacency
                        + 2 * 4 * n_pad * d_in_pad           # x read twice
                        + 4 * d_in_pad * d_out_pad           # W
                        + 4 * n_pad * d_out_pad))            # h written

    # ---- call 1: GIN aggregation + Linear ----------------------------------
    h = pl.pallas_call(
        _gin_linear_kernel,
        out_shape=jax.ShapeDtypeStruct((n_pad, d_out_pad), jnp.float32),
        grid_spec=pltpu.PrefetchScalarGridSpec(
            num_scalar_prefetch=0,
            grid=(m_tiles, k_tiles),
            in_specs=[
                pl.BlockSpec((tm, d_in_pad), lambda i, k: (i, 0)),      # x (self)
                pl.BlockSpec((tm, tk), lambda i, k: (i, k)),            # A tile
                pl.BlockSpec((tk, d_in_pad), lambda i, k: (k, 0)),      # x (nbrs)
                pl.BlockSpec((d_in_pad, d_out_pad), lambda i, k: (0, 0)),  # W
                pl.BlockSpec((1, d_out_pad), lambda i, k: (0, 0)),      # b
            ],
            out_specs=pl.BlockSpec((tm, d_out_pad), lambda i, k: (i, 0)),
            scratch_shapes=[pltpu.VMEM((tm, d_in_pad), jnp.float32)],
        ),
        compiler_params=pltpu.CompilerParams(
            dimension_semantics=("parallel", "arbitrary"),
            vmem_limit_bytes=_VMEM_LIMIT),
        cost_estimate=cost,
    )(x_pad, adj, x_pad, w_pad, b_pad)

    # ---- call 2: BN batch statistics (sum, sumsq over real nodes) ----------
    stats_kernel = functools.partial(_bn_stats_kernel, tm=tm, n_valid=n)
    s, sq = pl.pallas_call(
        stats_kernel,
        out_shape=(jax.ShapeDtypeStruct((1, d_out_pad), jnp.float32),
                   jax.ShapeDtypeStruct((1, d_out_pad), jnp.float32)),
        grid_spec=pltpu.PrefetchScalarGridSpec(
            num_scalar_prefetch=0,
            grid=(m_tiles,),
            in_specs=[pl.BlockSpec((tm, d_out_pad), lambda i: (i, 0))],
            out_specs=[pl.BlockSpec((1, d_out_pad), lambda i: (0, 0)),
                       pl.BlockSpec((1, d_out_pad), lambda i: (0, 0))],
        ),
        compiler_params=pltpu.CompilerParams(
            dimension_semantics=("arbitrary",),
            vmem_limit_bytes=_VMEM_LIMIT),
    )(h)

    # Fold stats into a single per-feature scale/shift (tiny [1, 128] op).
    inv_n = 1.0 / n
    mean = s * inv_n
    var = jnp.maximum(sq * inv_n - mean * mean, 0.0)
    scale = gamma_pad * jax.lax.rsqrt(var + BN_EPS)
    shift = beta_pad - mean * scale

    # ---- call 3: BN apply (one FMA per element) -----------------------------
    y = pl.pallas_call(
        _bn_apply_kernel,
        out_shape=jax.ShapeDtypeStruct((n_pad, d_out_pad), jnp.float32),
        grid_spec=pltpu.PrefetchScalarGridSpec(
            num_scalar_prefetch=0,
            grid=(m_tiles,),
            in_specs=[pl.BlockSpec((tm, d_out_pad), lambda i: (i, 0)),
                      pl.BlockSpec((1, d_out_pad), lambda i: (0, 0)),
                      pl.BlockSpec((1, d_out_pad), lambda i: (0, 0))],
            out_specs=pl.BlockSpec((tm, d_out_pad), lambda i: (i, 0)),
        ),
        compiler_params=pltpu.CompilerParams(
            dimension_semantics=("parallel",),
            vmem_limit_bytes=_VMEM_LIMIT),
    )(h, scale, shift)

    return y[:n, :d_out]


if __name__ == "__main__":
    # Small, deterministic problem: N nodes, input_dim -> out_dim.
    N, INPUT_DIM, OUT_DIM, E = 32, 16, 32, 64

    key = jax.random.PRNGKey(0)
    kx, ke_src, ke_dst, kw, kb = jax.random.split(key, 5)

    x = jax.random.normal(kx, (N, INPUT_DIM), dtype=jnp.float32)
    edge_index = jnp.stack(
        [jax.random.randint(ke_src, (E,), 0, N, dtype=jnp.int32),
         jax.random.randint(ke_dst, (E,), 0, N, dtype=jnp.int32)],
        axis=0,
    )  # [2, E]

    # PyTorch Linear-style init; W stored as [D_in, D_out] so kernel does agg @ W.
    bound = 1.0 / (INPUT_DIM ** 0.5)
    w = jax.random.uniform(kw, (INPUT_DIM, OUT_DIM), jnp.float32, -bound, bound)
    b = jax.random.uniform(kb, (1, OUT_DIM), jnp.float32, -bound, bound)
    gamma = jnp.ones((1, OUT_DIM), jnp.float32)   # BatchNorm1d weight
    beta = jnp.zeros((1, OUT_DIM), jnp.float32)   # BatchNorm1d bias
    # TODO(synk): dropout attribute of the module is never used in forward(); nothing to port.

    out = gin_1_bn_forward(x, edge_index, w, b, gamma, beta)
    jax.block_until_ready(out)

    # Sanity check against a pure-JAX reference.
    adj_ref = jnp.zeros((N, N), jnp.float32).at[edge_index[1], edge_index[0]].add(1.0)
    h_ref = ((1.0 + EPS_GIN) * x + adj_ref @ x) @ w + b
    mean_ref = h_ref.mean(0, keepdims=True)
    var_ref = ((h_ref - mean_ref) ** 2).mean(0, keepdims=True)
    y_ref = (h_ref - mean_ref) / jnp.sqrt(var_ref + BN_EPS) * gamma + beta
    assert jnp.allclose(out, y_ref, atol=1e-3, rtol=1e-3), "mismatch vs reference"

    print("KERNEL_OK")
</pallas_src>

<mosaic_0001>
module attributes {stable_mosaic.version = 11 : i64} {
  func.func @_gin_linear_kernel(%arg0: i32, %arg1: i32, %arg2: memref<128x128xf32, #tpu.memory_space<vmem>>, %arg3: memref<128x128xbf16, #tpu.memory_space<vmem>>, %arg4: memref<128x128xf32, #tpu.memory_space<vmem>>, %arg5: memref<128x128xf32, #tpu.memory_space<vmem>>, %arg6: memref<1x128xf32, #tpu.memory_space<vmem>>, %arg7: memref<128x128xf32, #tpu.memory_space<vmem>>, %arg8: memref<128x128xf32, #tpu.memory_space<vmem>>) attributes {dimension_semantics = [#tpu.dimension_semantics<parallel>, #tpu.dimension_semantics<arbitrary>], iteration_bounds = array<i64: 1, 1>, scalar_prefetch = 0 : i64, scratch_operands = 1 : i64, tpu.core_type = #tpu.core_type<tc>, window_params = [{transform_indices = @transform_0, window_bounds = array<i64: 128, 128>}, {transform_indices = @transform_1, window_bounds = array<i64: 128, 128>}, {transform_indices = @transform_2, window_bounds = array<i64: 128, 128>}, {pipeline_mode = #tpu.pipeline_mode<synchronous>, transform_indices = @transform_3, window_bounds = array<i64: 128, 128>}, {pipeline_mode = #tpu.pipeline_mode<synchronous>, transform_indices = @transform_4, window_bounds = array<i64: 1, 128>}, {transform_indices = @transform_5, window_bounds = array<i64: 128, 128>}]} {
    %c0_i32 = arith.constant 0 : i32
    %0 = arith.cmpi eq, %arg1, %c0_i32 : i32
    %1 = arith.extui %0 : i1 to i32
    %c0_i32_0 = arith.constant 0 : i32
    %2 = arith.cmpi ne, %1, %c0_i32_0 : i32
    scf.if %2 {
      %c0_10 = arith.constant 0 : index
      %c0_11 = arith.constant 0 : index
      %13 = vector.load %arg2[%c0_10, %c0_11] : memref<128x128xf32, #tpu.memory_space<vmem>>, vector<128x128xf32>
      %cst_12 = arith.constant 1.000000e+00 : f32
      %14 = vector.broadcast %cst_12 : f32 to vector<128x128xf32>
      %15 = arith.mulf %14, %13 : vector<128x128xf32>
      %c0_13 = arith.constant 0 : index
      %c0_14 = arith.constant 0 : index
      %16 = vector.load %arg8[%c0_13, %c0_14] : memref<128x128xf32, #tpu.memory_space<vmem>>, vector<128x128xf32>
      tpu.vector_store %arg8[%c0_13, %c0_14], %15 {strides = array<i32>} : memref<128x128xf32, #tpu.memory_space<vmem>>, vector<128x128xf32>,
    } else {
    }
    %c0 = arith.constant 0 : index
    %c0_1 = arith.constant 0 : index
    %3 = vector.load %arg8[%c0, %c0_1] : memref<128x128xf32, #tpu.memory_space<vmem>>, vector<128x128xf32>
    %c0_2 = arith.constant 0 : index
    %c0_3 = arith.constant 0 : index
    %4 = vector.load %arg3[%c0_2, %c0_3] : memref<128x128xbf16, #tpu.memory_space<vmem>>, vector<128x128xbf16>
    %5 = arith.extf %4 : vector<128x128xbf16> to vector<128x128xf32>
    %c0_4 = arith.constant 0 : index
    %c0_5 = arith.constant 0 : index
    %6 = vector.load %arg4[%c0_4, %c0_5] : memref<128x128xf32, #tpu.memory_space<vmem>>, vector<128x128xf32>
    %cst = arith.constant dense<0.000000e+00> : vector<128x128xf32>
    %7 = tpu.matmul %5, %6, %cst {dimension_numbers = #tpu.dot_dimension_numbers<[1], [0], [0], [1], [0, 0, 1, 1], [], []>} : vector<128x128xf32>, vector<128x128xf32>, vector<128x128xf32> -> vector<128x128xf32>
    %8 = arith.addf %3, %7 : vector<128x128xf32>
    %c0_6 = arith.constant 0 : index
    %c0_7 = arith.constant 0 : index
    %9 = vector.load %arg8[%c0_6, %c0_7] : memref<128x128xf32, #tpu.memory_space<vmem>>, vector<128x128xf32>
    tpu.vector_store %arg8[%c0_6, %c0_7], %8 {strides = array<i32>} : memref<128x128xf32, #tpu.memory_space<vmem>>, vector<128x128xf32>,
    %c0_i32_8 = arith.constant 0 : i32
    %10 = arith.cmpi eq, %arg1, %c0_i32_8 : i32
    %11 = arith.extui %10 : i1 to i32
    %c0_i32_9 = arith.constant 0 : i32
    %12 = arith.cmpi ne, %11, %c0_i32_9 : i32
    scf.if %12 {
      %c0_10 = arith.constant 0 : index
      %c0_11 = arith.constant 0 : index
      %13 = vector.load %arg8[%c0_10, %c0_11] : memref<128x128xf32, #tpu.memory_space<vmem>>, vector<128x128xf32>
      %c0_12 = arith.constant 0 : index
      %c0_13 = arith.constant 0 : index
      %14 = vector.load %arg5[%c0_12, %c0_13] : memref<128x128xf32, #tpu.memory_space<vmem>>, vector<128x128xf32>
      %cst_14 = arith.constant dense<0.000000e+00> : vector<128x128xf32>
      %15 = tpu.matmul %13, %14, %cst_14 {dimension_numbers = #tpu.dot_dimension_numbers<[1], [0], [0], [1], [0, 0, 1, 1], [], []>} : vector<128x128xf32>, vector<128x128xf32>, vector<128x128xf32> -> vector<128x128xf32>
      %c0_15 = arith.constant 0 : index
      %c0_16 = arith.constant 0 : index
      %16 = vector.load %arg6[%c0_15, %c0_16] : memref<1x128xf32, #tpu.memory_space<vmem>>, vector<1x128xf32>
      %17 = vector.broadcast %16 : vector<1x128xf32> to vector<128x128xf32>
      %18 = arith.addf %15, %17 : vector<128x128xf32>
      %c0_17 = arith.constant 0 : index
      %c0_18 = arith.constant 0 : index
      %19 = vector.load %arg7[%c0_17, %c0_18] : memref<128x128xf32, #tpu.memory_space<vmem>>, vector<128x128xf32>
      tpu.vector_store %arg7[%c0_17, %c0_18], %18 {strides = array<i32>} : memref<128x128xf32, #tpu.memory_space<vmem>>, vector<128x128xf32>,
    } else {
    }
    return
  }
  func.func @transform_0(%arg0: i32, %arg1: i32) -> (i32, i32) {
    %c0_i32 = arith.constant 0 : i32
    %c0_i32_0 = arith.constant 0 : i32
    return %arg0, %c0_i32 : i32, i32
  }
  func.func @transform_1(%arg0: i32, %arg1: i32) -> (i32, i32) {
    %c0_i32 = arith.constant 0 : i32
    return %arg0, %arg1 : i32, i32
  }
  func.func @transform_2(%arg0: i32, %arg1: i32) -> (i32, i32) {
    %c0_i32 = arith.constant 0 : i32
    %c0_i32_0 = arith.constant 0 : i32
    return %arg1, %c0_i32 : i32, i32
  }
  func.func @transform_3(%arg0: i32, %arg1: i32) -> (i32, i32) {
    %c0_i32 = arith.constant 0 : i32
    %c0_i32_0 = arith.constant 0 : i32
    %c0_i32_1 = arith.constant 0 : i32
    return %c0_i32, %c0_i32_0 : i32, i32
  }
  func.func @transform_4(%arg0: i32, %arg1: i32) -> (i32, i32) {
    %c0_i32 = arith.constant 0 : i32
    %c0_i32_0 = arith.constant 0 : i32
    %c0_i32_1 = arith.constant 0 : i32
    return %c0_i32, %c0_i32_0 : i32, i32
  }
  func.func @transform_5(%arg0: i32, %arg1: i32) -> (i32, i32) {
    %c0_i32 = arith.constant 0 : i32
    %c0_i32_0 = arith.constant 0 : i32
    return %arg0, %c0_i32 : i32, i32
  }
}

</mosaic_0001>

<llo_original>
// kernel: tpu_custom_call.1
$region0: #{tpu_custom_call.1}
  #allocation0 [shape = 'u32[]', space=smem, size = 0x4, offset = 0x4, fixed_abs, tag = 'smem constant byte address 0x4 - core index']
  #allocation1 [shape = 'u32[144,128]{1,0:T(1,128)}', space=vmem, size = 0x12000, scoped, tag = 'internal scratch']
  #allocation2 [shape = 'f32[128,128]{1,0:T(8,128)}', space=vmem, size = 0x10000, scoped, tag = 'scratch operand']
  %s0 = inlined_call_operand.hbm [shape: f32[128,128], index: 0, kind: input, shape index: {}]
  %s1 = inlined_call_operand.hbm [shape: bf16[128,128], index: 1, kind: input, shape index: {}]
  %s2 = inlined_call_operand.hbm [shape: f32[128,128], index: 2, kind: input, shape index: {}]
  %s3 = inlined_call_operand.hbm [shape: f32[128,128], index: 3, kind: input, shape index: {}]
  %s4 = inlined_call_operand.vmem [shape: f32[1,128], index: 4, kind: input, shape index: {}]
  %s5 = inlined_call_operand.hbm [shape: f32[128,128], index: 5, kind: output, shape index: {}]
  %s6 = sld [smem:[#allocation0]]
  $region54: #{tpu_custom_call.1} parent=0
    _
  %s8 = ssub.s32 1, %s6
  %s9 = scalar_select 0, %s8, %s6
  $region1: #{tpu_custom_call.1} parent=0
    #allocation3 [shape = 'u8[65536]{0}', space=vmem, size = 0x10000, scoped, tag = 'input window, operand 0, single buffered']
    #allocation4 [shape = 's32[1]{0}', space=sflag, size = 0x4, scoped, tag = 'scoped memory for tpu_custom_call.1']
    #allocation5 [shape = 's32[1]{0}', space=sflag, size = 0x4, scoped, tag = 'scoped memory for tpu_custom_call.1']
    #allocation6 [shape = 'u8[32768]{0}', space=vmem, size = 0x8000, scoped, tag = 'input window, operand 1, single buffered']
    #allocation7 [shape = 's32[1]{0}', space=sflag, size = 0x4, scoped, tag = 'scoped memory for tpu_custom_call.1']
    #allocation8 [shape = 'u8[65536]{0}', space=vmem, size = 0x10000, scoped, tag = 'input window, operand 2, single buffered']
    #allocation9 [shape = 'u8[65536]{0}', space=vmem, size = 0x10000, scoped, tag = 'input window, operand 3, single buffered']
    #allocation10 [shape = 's32[1]{0}', space=sflag, size = 0x4, scoped, tag = 'scoped memory for tpu_custom_call.1']
    #allocation11 [shape = 'u8[65536]{0}', space=vmem, size = 0x10000, scoped, tag = 'output window, operand 0, single buffered']
    %10 = vsyncpa [#allocation4], 0
    %11 = vsyncpa [#allocation7], 0
    %12 = vsyncpa [#allocation10], 0
    %13 = vsyncpa [#allocation5], 0
    // Predicated region
    $region2: #{tpu_custom_call.1} parent=1 // pred_check
      _
    $region3: #{tpu_custom_call.1} parent=1 // pred_check_branch
      %15 = sbr.rel (0) target = $region5
    $region4: #{tpu_custom_call.1} parent=1 // pred_region
      %s17 = ssub.s32 2048, 2048
      %18 = vsyncadd [#allocation4], %s17
      %s19 = sshll.u32 [#allocation3], 4
      %s20 = int_to_ptr.vmem [resolvable:$true] %s19
      %25 = dma.hbm_to_vmem [thread:$0]  %s0, 2048, %s20, [#allocation4], 128, 128, 8
    $region5: #{tpu_custom_call.1} parent=1 // pred_fallthru
      _
    // Predicated region
    $region6: #{tpu_custom_call.1} parent=1 // pred_check
      _
    $region7: #{tpu_custom_call.1} parent=1 // pred_check_branch
      %27 = sbr.rel (0) target = $region9
    $region8: #{tpu_custom_call.1} parent=1 // pred_region
      %s29 = ssub.s32 1024, 1024
      %30 = vsyncadd [#allocation7], %s29
      %s31 = sshll.u32 [#allocation6], 4
      %s32 = int_to_ptr.vmem [resolvable:$true] %s31
      %37 = dma.hbm_to_vmem [thread:$0]  %s1, 1024, %s32, [#allocation7], 64, 64, 4
    $region9: #{tpu_custom_call.1} parent=1 // pred_fallthru
      _
    // Predicated region
    $region10: #{tpu_custom_call.1} parent=1 // pred_check
      _
    $region11: #{tpu_custom_call.1} parent=1 // pred_check_branch
      %39 = sbr.rel (0) target = $region13
    $region12: #{tpu_custom_call.1} parent=1 // pred_region
      %s41 = ssub.s32 2048, 2048
      %42 = vsyncadd [#allocation7], %s41
      %s43 = sshll.u32 [#allocation8], 4
      %s44 = int_to_ptr.vmem [resolvable:$true] %s43
      %49 = dma.hbm_to_vmem [thread:$0]  %s2, 2048, %s44, [#allocation7], 128, 128, 8
    $region13: #{tpu_custom_call.1} parent=1 // pred_fallthru
      _
    // Predicated region
    $region14: #{tpu_custom_call.1} parent=1 // pred_check
      _
    $region15: #{tpu_custom_call.1} parent=1 // pred_check_branch
      %51 = sbr.rel (0) target = $region17
    $region16: #{tpu_custom_call.1} parent=1 // pred_region
      %s53 = ssub.s32 2048, 2048
      %54 = vsyncadd [#allocation10], %s53
      %s55 = sshll.u32 [#allocation9], 4
      %s56 = int_to_ptr.vmem [resolvable:$true] %s55
      %61 = dma.hbm_to_vmem [thread:$0]  %s3, 2048, %s56, [#allocation10], 128, 128, 8
    $region17: #{tpu_custom_call.1} parent=1 // pred_fallthru
      _
    // Predicated region
    $region18: #{tpu_custom_call.1} parent=1 // pred_check
      _
    $region19: #{tpu_custom_call.1} parent=1 // pred_check_branch
      %63 = sbr.rel (0) target = $region21
    $region20: #{tpu_custom_call.1} parent=1 // pred_region
      _
    $region21: #{tpu_custom_call.1} parent=1 // pred_fallthru
      _
    // Predicated region
    $region22: #{tpu_custom_call.1} parent=1 // pred_check
      _
    $region23: #{tpu_custom_call.1} parent=1 // pred_check_branch
      %65 = sbr.rel (0) target = $region25
    $region24: #{tpu_custom_call.1} parent=1 // pred_region
      %66 = dma.done [#allocation4], 2048
    $region25: #{tpu_custom_call.1} parent=1 // pred_fallthru
      _
    // Predicated region
    $region26: #{tpu_custom_call.1} parent=1 // pred_check
      _
    $region27: #{tpu_custom_call.1} parent=1 // pred_check_branch
      %68 = sbr.rel (0) target = $region29
    $region28: #{tpu_custom_call.1} parent=1 // pred_region
      %69 = dma.done [#allocation7], 1024
    $region29: #{tpu_custom_call.1} parent=1 // pred_fallthru
      _
    // Predicated region
    $region30: #{tpu_custom_call.1} parent=1 // pred_check
      _
    $region31: #{tpu_custom_call.1} parent=1 // pred_check_branch
      %71 = sbr.rel (0) target = $region33
    $region32: #{tpu_custom_call.1} parent=1 // pred_region
      %72 = dma.done [#allocation7], 2048
    $region33: #{tpu_custom_call.1} parent=1 // pred_fallthru
      _
    // Predicated region
    $region34: #{tpu_custom_call.1} parent=1 // pred_check
      _
    $region35: #{tpu_custom_call.1} parent=1 // pred_check_branch
      %74 = sbr.rel (0) target = $region37
    $region36: #{tpu_custom_call.1} parent=1 // pred_region
      %75 = dma.done [#allocation10], 2048
    $region37: #{tpu_custom_call.1} parent=1 // pred_fallthru
      _
    %p76 = scmp.eq.s32.totalorder 0, 0
    // Predicated region
    $region38: #{tpu_custom_call.1} parent=1 // pred_check
      %p77 = pneg %p76
    $region39: #{tpu_custom_call.1} parent=1 // pred_check_branch
      %79 = sbr.rel (%p77) target = $region41
    $region40: #{tpu_custom_call.1} parent=1 // pred_region
      %v80 = vld [vmem:[#allocation3] sm:$0xff]
      %v81 = vld [vmem:[#allocation3 + $0x8] sm:$0xff]
      %v82 = vld [vmem:[#allocation3 + $0x10] sm:$0xff]
      %v83 = vld [vmem:[#allocation3 + $0x18] sm:$0xff]
      %v84 = vld [vmem:[#allocation3 + $0x20] sm:$0xff]
      %v85 = vld [vmem:[#allocation3 + $0x28] sm:$0xff]
      %v86 = vld [vmem:[#allocation3 + $0x30] sm:$0xff]
      %v87 = vld [vmem:[#allocation3 + $0x38] sm:$0xff]
      %v88 = vld [vmem:[#allocation3 + $0x40] sm:$0xff]
      %v89 = vld [vmem:[#allocation3 + $0x48] sm:$0xff]
      %v90 = vld [vmem:[#allocation3 + $0x50] sm:$0xff]
      %v91 = vld [vmem:[#allocation3 + $0x58] sm:$0xff]
      %v92 = vld [vmem:[#allocation3 + $0x60] sm:$0xff]
      %v93 = vld [vmem:[#allocation3 + $0x68] sm:$0xff]
      %v94 = vld [vmem:[#allocation3 + $0x70] sm:$0xff]
      %v95 = vld [vmem:[#allocation3 + $0x78] sm:$0xff]
      %96 = vst [vmem:[#allocation2] sm:$0xff] %v80
      %97 = vst [vmem:[#allocation2 + $0x8] sm:$0xff] %v81
      %98 = vst [vmem:[#allocation2 + $0x10] sm:$0xff] %v82
      %99 = vst [vmem:[#allocation2 + $0x18] sm:$0xff] %v83
      %100 = vst [vmem:[#allocation2 + $0x20] sm:$0xff] %v84
      %101 = vst [vmem:[#allocation2 + $0x28] sm:$0xff] %v85
      %102 = vst [vmem:[#allocation2 + $0x30] sm:$0xff] %v86
      %103 = vst [vmem:[#allocation2 + $0x38] sm:$0xff] %v87
      %104 = vst [vmem:[#allocation2 + $0x40] sm:$0xff] %v88
      %105 = vst [vmem:[#allocation2 + $0x48] sm:$0xff] %v89
      %106 = vst [vmem:[#allocation2 + $0x50] sm:$0xff] %v90
      %107 = vst [vmem:[#allocation2 + $0x58] sm:$0xff] %v91
      %108 = vst [vmem:[#allocation2 + $0x60] sm:$0xff] %v92
      %109 = vst [vmem:[#allocation2 + $0x68] sm:$0xff] %v93
      %110 = vst [vmem:[#allocation2 + $0x70] sm:$0xff] %v94
      %111 = vst [vmem:[#allocation2 + $0x78] sm:$0xff] %v95
    $region41: #{tpu_custom_call.1} parent=1 // pred_fallthru
      _
    %v112 = vld [vmem:[#allocation2] sm:$0xff]
    %v113 = vld [vmem:[#allocation2 + $0x8] sm:$0xff]
    %v114 = vld [vmem:[#allocation2 + $0x10] sm:$0xff]
    %v115 = vld [vmem:[#allocation2 + $0x18] sm:$0xff]
    %v116 = vld [vmem:[#allocation2 + $0x20] sm:$0xff]
    %v117 = vld [vmem:[#allocation2 + $0x28] sm:$0xff]
    %v118 = vld [vmem:[#allocation2 + $0x30] sm:$0xff]
    %v119 = vld [vmem:[#allocation2 + $0x38] sm:$0xff]
    %v120 = vld [vmem:[#allocation2 + $0x40] sm:$0xff]
    %v121 = vld [vmem:[#allocation2 + $0x48] sm:$0xff]
    %v122 = vld [vmem:[#allocation2 + $0x50] sm:$0xff]
    %v123 = vld [vmem:[#allocation2 + $0x58] sm:$0xff]
    %v124 = vld [vmem:[#allocation2 + $0x60] sm:$0xff]
    %v125 = vld [vmem:[#allocation2 + $0x68] sm:$0xff]
    %v126 = vld [vmem:[#allocation2 + $0x70] sm:$0xff]
    %v127 = vld [vmem:[#allocation2 + $0x78] sm:$0xff]
    %v128 = vld [vmem:[#allocation6] sm:$0xf]
    %v129 = vld [vmem:[#allocation6 + $0x4] sm:$0xf]
    %v130 = vld [vmem:[#allocation6 + $0x8] sm:$0xf]
    %v131 = vld [vmem:[#allocation6 + $0xc] sm:$0xf]
    %v132 = vld [vmem:[#allocation6 + $0x10] sm:$0xf]
    %v133 = vld [vmem:[#allocation6 + $0x14] sm:$0xf]
    %v134 = vld [vmem:[#allocation6 + $0x18] sm:$0xf]
    %v135 = vld [vmem:[#allocation6 + $0x1c] sm:$0xf]
    %v136 = vld [vmem:[#allocation6 + $0x20] sm:$0xf]
    %v137 = vld [vmem:[#allocation6 + $0x24] sm:$0xf]
    %v138 = vld [vmem:[#allocation6 + $0x28] sm:$0xf]
    %v139 = vld [vmem:[#allocation6 + $0x2c] sm:$0xf]
    %v140 = vld [vmem:[#allocation6 + $0x30] sm:$0xf]
    %v141 = vld [vmem:[#allocation6 + $0x34] sm:$0xf]
    %v142 = vld [vmem:[#allocation6 + $0x38] sm:$0xf]
    %v143 = vld [vmem:[#allocation6 + $0x3c] sm:$0xf]
    %v144 = vunpack.c.l.bf16 %v128
    %v145 = vunpack.c.l.bf16 %v129
    %v146 = vunpack.c.l.bf16 %v130
    %v147 = vunpack.c.l.bf16 %v131
    %v148 = vunpack.c.l.bf16 %v132
    %v149 = vunpack.c.l.bf16 %v133
    %v150 = vunpack.c.l.bf16 %v134
    %v151 = vunpack.c.l.bf16 %v135
    %v152 = vunpack.c.l.bf16 %v136
    %v153 = vunpack.c.l.bf16 %v137
    %v154 = vunpack.c.l.bf16 %v138
    %v155 = vunpack.c.l.bf16 %v139
    %v156 = vunpack.c.l.bf16 %v140
    %v157 = vunpack.c.l.bf16 %v141
    %v158 = vunpack.c.l.bf16 %v142
    %v159 = vunpack.c.l.bf16 %v143
    %v160 = vld [vmem:[#allocation8] sm:$0xff]
    %v161 = vld [vmem:[#allocation8 + $0x8] sm:$0xff]
    %v162 = vld [vmem:[#allocation8 + $0x10] sm:$0xff]
    %v163 = vld [vmem:[#allocation8 + $0x18] sm:$0xff]
    %v164 = vld [vmem:[#allocation8 + $0x20] sm:$0xff]
    %v165 = vld [vmem:[#allocation8 + $0x28] sm:$0xff]
    %v166 = vld [vmem:[#allocation8 + $0x30] sm:$0xff]
    %v167 = vld [vmem:[#allocation8 + $0x38] sm:$0xff]
    %v168 = vld [vmem:[#allocation8 + $0x40] sm:$0xff]
    %v169 = vld [vmem:[#allocation8 + $0x48] sm:$0xff]
    %v170 = vld [vmem:[#allocation8 + $0x50] sm:$0xff]
    %v171 = vld [vmem:[#allocation8 + $0x58] sm:$0xff]
    %v172 = vld [vmem:[#allocation8 + $0x60] sm:$0xff]
    %v173 = vld [vmem:[#allocation8 + $0x68] sm:$0xff]
    %v174 = vld [vmem:[#allocation8 + $0x70] sm:$0xff]
    %v175 = vld [vmem:[#allocation8 + $0x78] sm:$0xff]
    %176 = vmatprep.subr.mxu0 0.0
    %177 = vmatpush1.msra.mxu0 %v160
    %178 = vmatprep.subr.mxu0 0.0
    %179 = vmatpush1.msra.mxu0 %v161
    %180 = vmatprep.subr.mxu0 0.0
    %181 = vmatpush1.msra.mxu0 %v162
    %182 = vmatprep.subr.mxu0 0.0
    %183 = vmatpush1.msra.mxu0 %v163
    %184 = vmatprep.subr.mxu0 0.0
    %185 = vmatpush1.msra.mxu0 %v164
    %186 = vmatprep.subr.mxu0 0.0
    %187 = vmatpush1.msra.mxu0 %v165
    %188 = vmatprep.subr.mxu0 0.0
    %189 = vmatpush1.msra.mxu0 %v166
    %190 = vmatprep.subr.mxu0 0.0
    %191 = vmatpush1.msra.mxu0 %v167
    %192 = vmatprep.subr.mxu0 0.0
    %193 = vmatpush1.msra.mxu0 %v168
    %194 = vmatprep.subr.mxu0 0.0
    %195 = vmatpush1.msra.mxu0 %v169
    %196 = vmatprep.subr.mxu0 0.0
    %197 = vmatpush1.msra.mxu0 %v170
    %198 = vmatprep.subr.mxu0 0.0
    %199 = vmatpush1.msra.mxu0 %v171
    %200 = vmatprep.subr.mxu0 0.0
    %201 = vmatpush1.msra.mxu0 %v172
    %202 = vmatprep.subr.mxu0 0.0
    %203 = vmatpush1.msra.mxu0 %v173
    %204 = vmatprep.subr.mxu0 0.0
    %205 = vmatpush1.msra.mxu0 %v174
    %206 = vmatprep.subr.mxu0 0.0
    %207 = vmatpush1.msra.mxu0 %v175
    %208 = vmatprep.subr.mxu0 0.0
    %209 = vmatpush1.msra.mxu0 0.0
    %210 = vmatprep.subr.mxu0 0.0
    %211 = vmatpush1.msra.mxu0 0.0
    %212 = vmatprep.subr.mxu0 0.0
    %213 = vmatpush1.msra.mxu0 0.0
    %214 = vmatprep.subr.mxu0 0.0
    %215 = vmatpush1.msra.mxu0 0.0
    %216 = vmatprep.subr.mxu0 0.0
    %217 = vmatpush1.msra.mxu0 0.0
    %218 = vmatprep.subr.mxu0 0.0
    %219 = vmatpush1.msra.mxu0 0.0
    %220 = vmatprep.subr.mxu0 0.0
    %221 = vmatpush1.msra.mxu0 0.0
    %222 = vmatprep.subr.mxu0 0.0
    %223 = vmatpush1.msra.mxu0 0.0
    %224 = vmatprep.subr.mxu0 0.0
    %225 = vmatpush1.msra.mxu0 0.0
    %226 = vmatprep.subr.mxu0 0.0
    %227 = vmatpush1.msra.mxu0 0.0
    %228 = vmatprep.subr.mxu0 0.0
    %229 = vmatpush1.msra.mxu0 0.0
    %230 = vmatprep.subr.mxu0 0.0
    %231 = vmatpush1.msra.mxu0 0.0
    %232 = vmatprep.subr.mxu0 0.0
    %233 = vmatpush1.msra.mxu0 0.0
    %234 = vmatprep.subr.mxu0 0.0
    %235 = vmatpush1.msra.mxu0 0.0
    %236 = vmatprep.subr.mxu0 0.0
    %237 = vmatpush1.msra.mxu0 0.0
    %238 = vmatprep.subr.mxu0 0.0
    %239 = vmatpush1.msra.mxu0 0.0
    %240 = vmatprep.mubr.f32.mxu0 0.0
    %241 = vmatmul.mubr.f32.gmra.mrb[0].mxu0 %v144
    %v242 = vpop.f32.mrb[0].mxu0
    %v243 = vadd.f32 0.0, %v242
    %v244 = vpop.f32.mrb[0].mxu0
    %245 = vmatprep.mubr.f32.mxu0 0.0
    %246 = vmatmul.mubr.f32.gmra.mrb[0].mxu0 %v145
    %v247 = vpop.f32.mrb[0].mxu0
    %v248 = vadd.f32 0.0, %v247
    %v249 = vpop.f32.mrb[0].mxu0
    %250 = vmatprep.mubr.f32.mxu0 0.0
    %251 = vmatmul.mubr.f32.gmra.mrb[0].mxu0 %v146
    %v252 = vpop.f32.mrb[0].mxu0
    %v253 = vadd.f32 0.0, %v252
    %v254 = vpop.f32.mrb[0].mxu0
    %255 = vmatprep.mubr.f32.mxu0 0.0
    %256 = vmatmul.mubr.f32.gmra.mrb[0].mxu0 %v147
    %v257 = vpop.f32.mrb[0].mxu0
    %v258 = vadd.f32 0.0, %v257
    %v259 = vpop.f32.mrb[0].mxu0
    %260 = vmatprep.mubr.f32.mxu0 0.0
    %261 = vmatmul.mubr.f32.gmra.mrb[0].mxu0 %v148
    %v262 = vpop.f32.mrb[0].mxu0
    %v263 = vadd.f32 0.0, %v262
    %v264 = vpop.f32.mrb[0].mxu0
    %265 = vmatprep.mubr.f32.mxu0 0.0
    %266 = vmatmul.mubr.f32.gmra.mrb[0].mxu0 %v149
    %v267 = vpop.f32.mrb[0].mxu0
    %v268 = vadd.f32 0.0, %v267
    %v269 = vpop.f32.mrb[0].mxu0
    %270 = vmatprep.mubr.f32.mxu0 0.0
    %271 = vmatmul.mubr.f32.gmra.mrb[0].mxu0 %v150
    %v272 = vpop.f32.mrb[0].mxu0
    %v273 = vadd.f32 0.0, %v272
    %v274 = vpop.f32.mrb[0].mxu0
    %275 = vmatprep.mubr.f32.mxu0 0.0
    %276 = vmatmul.mubr.f32.gmra.mrb[0].mxu0 %v151
    %v277 = vpop.f32.mrb[0].mxu0
    %v278 = vadd.f32 0.0, %v277
    %v279 = vpop.f32.mrb[0].mxu0
    %280 = vmatprep.mubr.f32.mxu0 0.0
    %281 = vmatmul.mubr.f32.gmra.mrb[0].mxu0 %v152
    %v282 = vpop.f32.mrb[0].mxu0
    %v283 = vadd.f32 0.0, %v282
    %v284 = vpop.f32.mrb[0].mxu0
    %285 = vmatprep.mubr.f32.mxu0 0.0
    %286 = vmatmul.mubr.f32.gmra.mrb[0].mxu0 %v153
    %v287 = vpop.f32.mrb[0].mxu0
    %v288 = vadd.f32 0.0, %v287
    %v289 = vpop.f32.mrb[0].mxu0
    %290 = vmatprep.mubr.f32.mxu0 0.0
    %291 = vmatmul.mubr.f32.gmra.mrb[0].mxu0 %v154
    %v292 = vpop.f32.mrb[0].mxu0
    %v293 = vadd.f32 0.0, %v292
    %v294 = vpop.f32.mrb[0].mxu0
    %295 = vmatprep.mubr.f32.mxu0 0.0
    %296 = vmatmul.mubr.f32.gmra.mrb[0].mxu0 %v155
    %v297 = vpop.f32.mrb[0].mxu0
    %v298 = vadd.f32 0.0, %v297
    %v299 = vpop.f32.mrb[0].mxu0
    %300 = vmatprep.mubr.f32.mxu0 0.0
    %301 = vmatmul.mubr.f32.gmra.mrb[0].mxu0 %v156
    %v302 = vpop.f32.mrb[0].mxu0
    %v303 = vadd.f32 0.0, %v302
    %v304 = vpop.f32.mrb[0].mxu0
    %305 = vmatprep.mubr.f32.mxu0 0.0
    %306 = vmatmul.mubr.f32.gmra.mrb[0].mxu0 %v157
    %v307 = vpop.f32.mrb[0].mxu0
    %v308 = vadd.f32 0.0, %v307
    %v309 = vpop.f32.mrb[0].mxu0
    %310 = vmatprep.mubr.f32.mxu0 0.0
    %311 = vmatmul.mubr.f32.gmra.mrb[0].mxu0 %v158
    %v312 = vpop.f32.mrb[0].mxu0
    %v313 = vadd.f32 0.0, %v312
    %v314 = vpop.f32.mrb[0].mxu0
    %315 = vmatprep.mubr.f32.mxu0 0.0
    %316 = vmatmul.mubr.f32.gmra.mrb[0].mxu0 %v159
    %v317 = vpop.f32.mrb[0].mxu0
    %v318 = vadd.f32 0.0, %v317
    %v319 = vpop.f32.mrb[0].mxu0
    %320 = vdwg.mxu0
    %v321 = vadd.f32 %v112, %v243
    %v322 = vadd.f32 %v113, %v248
    %v323 = vadd.f32 %v114, %v253
    %v324 = vadd.f32 %v115, %v258
    %v325 = vadd.f32 %v116, %v263
    %v326 = vadd.f32 %v117, %v268
    %v327 = vadd.f32 %v118, %v273
    %v328 = vadd.f32 %v119, %v278
    %v329 = vadd.f32 %v120, %v283
    %v330 = vadd.f32 %v121, %v288
    %v331 = vadd.f32 %v122, %v293
    %v332 = vadd.f32 %v123, %v298
    %v333 = vadd.f32 %v124, %v303
    %v334 = vadd.f32 %v125, %v308
    %v335 = vadd.f32 %v126, %v313
    %v336 = vadd.f32 %v127, %v318
    %337 = vst [vmem:[#allocation2] sm:$0xff] %v321
    %338 = vst [vmem:[#allocation2 + $0x8] sm:$0xff] %v322
    %339 = vst [vmem:[#allocation2 + $0x10] sm:$0xff] %v323
    %340 = vst [vmem:[#allocation2 + $0x18] sm:$0xff] %v324
    %341 = vst [vmem:[#allocation2 + $0x20] sm:$0xff] %v325
    %342 = vst [vmem:[#allocation2 + $0x28] sm:$0xff] %v326
    %343 = vst [vmem:[#allocation2 + $0x30] sm:$0xff] %v327
    %344 = vst [vmem:[#allocation2 + $0x38] sm:$0xff] %v328
    %345 = vst [vmem:[#allocation2 + $0x40] sm:$0xff] %v329
    %346 = vst [vmem:[#allocation2 + $0x48] sm:$0xff] %v330
    %347 = vst [vmem:[#allocation2 + $0x50] sm:$0xff] %v331
    %348 = vst [vmem:[#allocation2 + $0x58] sm:$0xff] %v332
    %349 = vst [vmem:[#allocation2 + $0x60] sm:$0xff] %v333
    %350 = vst [vmem:[#allocation2 + $0x68] sm:$0xff] %v334
    %351 = vst [vmem:[#allocation2 + $0x70] sm:$0xff] %v335
    %352 = vst [vmem:[#allocation2 + $0x78] sm:$0xff] %v336
    // Predicated region
    $region42: #{tpu_custom_call.1} parent=1 // pred_check
      %p353 = pneg %p76
    $region43: #{tpu_custom_call.1} parent=1 // pred_check_branch
      %355 = sbr.rel (%p353) target = $region45
    $region44: #{tpu_custom_call.1} parent=1 // pred_region
      %v356 = vld [vmem:[#allocation2] sm:$0xff]
      %v357 = vld [vmem:[#allocation2 + $0x8] sm:$0xff]
      %v358 = vld [vmem:[#allocation2 + $0x10] sm:$0xff]
      %v359 = vld [vmem:[#allocation2 + $0x18] sm:$0xff]
      %v360 = vld [vmem:[#allocation2 + $0x20] sm:$0xff]
      %v361 = vld [vmem:[#allocation2 + $0x28] sm:$0xff]
      %v362 = vld [vmem:[#allocation2 + $0x30] sm:$0xff]
      %v363 = vld [vmem:[#allocation2 + $0x38] sm:$0xff]
      %v364 = vld [vmem:[#allocation2 + $0x40] sm:$0xff]
      %v365 = vld [vmem:[#allocation2 + $0x48] sm:$0xff]
      %v366 = vld [vmem:[#allocation2 + $0x50] sm:$0xff]
      %v367 = vld [vmem:[#allocation2 + $0x58] sm:$0xff]
      %v368 = vld [vmem:[#allocation2 + $0x60] sm:$0xff]
      %v369 = vld [vmem:[#allocation2 + $0x68] sm:$0xff]
      %v370 = vld [vmem:[#allocation2 + $0x70] sm:$0xff]
      %v371 = vld [vmem:[#allocation2 + $0x78] sm:$0xff]
      %v372 = vld [vmem:[#allocation9] sm:$0xff]
      %v373 = vld [vmem:[#allocation9 + $0x8] sm:$0xff]
      %v374 = vld [vmem:[#allocation9 + $0x10] sm:$0xff]
      %v375 = vld [vmem:[#allocation9 + $0x18] sm:$0xff]
      %v376 = vld [vmem:[#allocation9 + $0x20] sm:$0xff]
      %v377 = vld [vmem:[#allocation9 + $0x28] sm:$0xff]
      %v378 = vld [vmem:[#allocation9 + $0x30] sm:$0xff]
      %v379 = vld [vmem:[#allocation9 + $0x38] sm:$0xff]
      %v380 = vld [vmem:[#allocation9 + $0x40] sm:$0xff]
      %v381 = vld [vmem:[#allocation9 + $0x48] sm:$0xff]
      %v382 = vld [vmem:[#allocation9 + $0x50] sm:$0xff]
      %v383 = vld [vmem:[#allocation9 + $0x58] sm:$0xff]
      %v384 = vld [vmem:[#allocation9 + $0x60] sm:$0xff]
      %v385 = vld [vmem:[#allocation9 + $0x68] sm:$0xff]
      %v386 = vld [vmem:[#allocation9 + $0x70] sm:$0xff]
      %v387 = vld [vmem:[#allocation9 + $0x78] sm:$0xff]
      %v388 = vld [vmem:[%s4] sm:$0x1]
      %v390 = vlaneseq
      %v391 = vshrl.u32 %v390, 7
      %v392 = vsub.s32 0, %v391
      %v393 = vrot.slane %v388, %v392
      %395 = vmatprep.subr.mxu0 0.0
      %396 = vmatpush1.msra.mxu0 %v372
      %397 = vmatprep.subr.mxu0 0.0
      %398 = vmatpush1.msra.mxu0 %v373
      %399 = vmatprep.subr.mxu0 0.0
      %400 = vmatpush1.msra.mxu0 %v374
      %401 = vmatprep.subr.mxu0 0.0
      %402 = vmatpush1.msra.mxu0 %v375
      %403 = vmatprep.subr.mxu0 0.0
      %404 = vmatpush1.msra.mxu0 %v376
      %405 = vmatprep.subr.mxu0 0.0
      %406 = vmatpush1.msra.mxu0 %v377
      %407 = vmatprep.subr.mxu0 0.0
      %408 = vmatpush1.msra.mxu0 %v378
      %409 = vmatprep.subr.mxu0 0.0
      %410 = vmatpush1.msra.mxu0 %v379
      %411 = vmatprep.subr.mxu0 0.0
      %412 = vmatpush1.msra.mxu0 %v380
      %413 = vmatprep.subr.mxu0 0.0
      %414 = vmatpush1.msra.mxu0 %v381
      %415 = vmatprep.subr.mxu0 0.0
      %416 = vmatpush1.msra.mxu0 %v382
      %417 = vmatprep.subr.mxu0 0.0
      %418 = vmatpush1.msra.mxu0 %v383
      %419 = vmatprep.subr.mxu0 0.0
      %420 = vmatpush1.msra.mxu0 %v384
      %421 = vmatprep.subr.mxu0 0.0
      %422 = vmatpush1.msra.mxu0 %v385
      %423 = vmatprep.subr.mxu0 0.0
      %424 = vmatpush1.msra.mxu0 %v386
      %425 = vmatprep.subr.mxu0 0.0
      %426 = vmatpush1.msra.mxu0 %v387
      %427 = vmatprep.subr.mxu0 0.0
      %428 = vmatpush1.msra.mxu0 0.0
      %429 = vmatprep.subr.mxu0 0.0
      %430 = vmatpush1.msra.mxu0 0.0
      %431 = vmatprep.subr.mxu0 0.0
      %432 = vmatpush1.msra.mxu0 0.0
      %433 = vmatprep.subr.mxu0 0.0
      %434 = vmatpush1.msra.mxu0 0.0
      %435 = vmatprep.subr.mxu0 0.0
      %436 = vmatpush1.msra.mxu0 0.0
      %437 = vmatprep.subr.mxu0 0.0
      %438 = vmatpush1.msra.mxu0 0.0
      %439 = vmatprep.subr.mxu0 0.0
      %440 = vmatpush1.msra.mxu0 0.0
      %441 = vmatprep.subr.mxu0 0.0
      %442 = vmatpush1.msra.mxu0 0.0
      %443 = vmatprep.subr.mxu0 0.0
      %444 = vmatpush1.msra.mxu0 0.0
      %445 = vmatprep.subr.mxu0 0.0
      %446 = vmatpush1.msra.mxu0 0.0
      %447 = vmatprep.subr.mxu0 0.0
      %448 = vmatpush1.msra.mxu0 0.0
      %449 = vmatprep.subr.mxu0 0.0
      %450 = vmatpush1.msra.mxu0 0.0
      %451 = vmatprep.subr.mxu0 0.0
      %452 = vmatpush1.msra.mxu0 0.0
      %453 = vmatprep.subr.mxu0 0.0
      %454 = vmatpush1.msra.mxu0 0.0
      %455 = vmatprep.subr.mxu0 0.0
      %456 = vmatpush1.msra.mxu0 0.0
      %457 = vmatprep.subr.mxu0 0.0
      %458 = vmatpush1.msra.mxu0 0.0
      %459 = vmatprep.mubr.f32.mxu0 0.0
      %460 = vmatmul.mubr.f32.gmra.mrb[0].mxu0 %v356
      %v461 = vpop.f32.mrb[0].mxu0
      %v462 = vadd.f32 %v393, %v461
      %v463 = vpop.f32.mrb[0].mxu0
      %464 = vmatprep.mubr.f32.mxu0 0.0
      %465 = vmatmul.mubr.f32.gmra.mrb[0].mxu0 %v357
      %v466 = vpop.f32.mrb[0].mxu0
      %v467 = vadd.f32 %v393, %v466
      %v468 = vpop.f32.mrb[0].mxu0
      %469 = vmatprep.mubr.f32.mxu0 0.0
      %470 = vmatmul.mubr.f32.gmra.mrb[0].mxu0 %v358
      %v471 = vpop.f32.mrb[0].mxu0
      %v472 = vadd.f32 %v393, %v471
      %v473 = vpop.f32.mrb[0].mxu0
      %474 = vmatprep.mubr.f32.mxu0 0.0
      %475 = vmatmul.mubr.f32.gmra.mrb[0].mxu0 %v359
      %v476 = vpop.f32.mrb[0].mxu0
      %v477 = vadd.f32 %v393, %v476
      %v478 = vpop.f32.mrb[0].mxu0
      %479 = vmatprep.mubr.f32.mxu0 0.0
      %480 = vmatmul.mubr.f32.gmra.mrb[0].mxu0 %v360
      %v481 = vpop.f32.mrb[0].mxu0
      %v482 = vadd.f32 %v393, %v481
      %v483 = vpop.f32.mrb[0].mxu0
      %484 = vmatprep.mubr.f32.mxu0 0.0
      %485 = vmatmul.mubr.f32.gmra.mrb[0].mxu0 %v361
      %v486 = vpop.f32.mrb[0].mxu0
      %v487 = vadd.f32 %v393, %v486
      %v488 = vpop.f32.mrb[0].mxu0
      %489 = vmatprep.mubr.f32.mxu0 0.0
      %490 = vmatmul.mubr.f32.gmra.mrb[0].mxu0 %v362
      %v491 = vpop.f32.mrb[0].mxu0
      %v492 = vadd.f32 %v393, %v491
      %v493 = vpop.f32.mrb[0].mxu0
      %494 = vmatprep.mubr.f32.mxu0 0.0
      %495 = vmatmul.mubr.f32.gmra.mrb[0].mxu0 %v363
      %v496 = vpop.f32.mrb[0].mxu0
      %v497 = vadd.f32 %v393, %v496
      %v498 = vpop.f32.mrb[0].mxu0
      %499 = vmatprep.mubr.f32.mxu0 0.0
      %500 = vmatmul.mubr.f32.gmra.mrb[0].mxu0 %v364
      %v501 = vpop.f32.mrb[0].mxu0
      %v502 = vadd.f32 %v393, %v501
      %v503 = vpop.f32.mrb[0].mxu0
      %504 = vmatprep.mubr.f32.mxu0 0.0
      %505 = vmatmul.mubr.f32.gmra.mrb[0].mxu0 %v365
      %v506 = vpop.f32.mrb[0].mxu0
      %v507 = vadd.f32 %v393, %v506
      %v508 = vpop.f32.mrb[0].mxu0
      %509 = vmatprep.mubr.f32.mxu0 0.0
      %510 = vmatmul.mubr.f32.gmra.mrb[0].mxu0 %v366
      %v511 = vpop.f32.mrb[0].mxu0
      %v512 = vadd.f32 %v393, %v511
      %v513 = vpop.f32.mrb[0].mxu0
      %514 = vmatprep.mubr.f32.mxu0 0.0
      %515 = vmatmul.mubr.f32.gmra.mrb[0].mxu0 %v367
      %v516 = vpop.f32.mrb[0].mxu0
      %v517 = vadd.f32 %v393, %v516
      %v518 = vpop.f32.mrb[0].mxu0
      %519 = vmatprep.mubr.f32.mxu0 0.0
      %520 = vmatmul.mubr.f32.gmra.mrb[0].mxu0 %v368
      %v521 = vpop.f32.mrb[0].mxu0
      %v522 = vadd.f32 %v393, %v521
      %v523 = vpop.f32.mrb[0].mxu0
      %524 = vmatprep.mubr.f32.mxu0 0.0
      %525 = vmatmul.mubr.f32.gmra.mrb[0].mxu0 %v369
      %v526 = vpop.f32.mrb[0].mxu0
      %v527 = vadd.f32 %v393, %v526
      %v528 = vpop.f32.mrb[0].mxu0
      %529 = vmatprep.mubr.f32.mxu0 0.0
      %530 = vmatmul.mubr.f32.gmra.mrb[0].mxu0 %v370
      %v531 = vpop.f32.mrb[0].mxu0
      %v532 = vadd.f32 %v393, %v531
      %v533 = vpop.f32.mrb[0].mxu0
      %534 = vmatprep.mubr.f32.mxu0 0.0
      %535 = vmatmul.mubr.f32.gmra.mrb[0].mxu0 %v371
      %v536 = vpop.f32.mrb[0].mxu0
      %v537 = vadd.f32 %v393, %v536
      %v538 = vpop.f32.mrb[0].mxu0
      %539 = vdwg.mxu0
      %540 = vst [vmem:[#allocation11] sm:$0xff] %v462
      %541 = vst [vmem:[#allocation11 + $0x8] sm:$0xff] %v467
      %542 = vst [vmem:[#allocation11 + $0x10] sm:$0xff] %v472
      %543 = vst [vmem:[#allocation11 + $0x18] sm:$0xff] %v477
      %544 = vst [vmem:[#allocation11 + $0x20] sm:$0xff] %v482
      %545 = vst [vmem:[#allocation11 + $0x28] sm:$0xff] %v487
      %546 = vst [vmem:[#allocation11 + $0x30] sm:$0xff] %v492
      %547 = vst [vmem:[#allocation11 + $0x38] sm:$0xff] %v497
      %548 = vst [vmem:[#allocation11 + $0x40] sm:$0xff] %v502
      %549 = vst [vmem:[#allocation11 + $0x48] sm:$0xff] %v507
      %550 = vst [vmem:[#allocation11 + $0x50] sm:$0xff] %v512
      %551 = vst [vmem:[#allocation11 + $0x58] sm:$0xff] %v517
      %552 = vst [vmem:[#allocation11 + $0x60] sm:$0xff] %v522
      %553 = vst [vmem:[#allocation11 + $0x68] sm:$0xff] %v527
      %554 = vst [vmem:[#allocation11 + $0x70] sm:$0xff] %v532
      %555 = vst [vmem:[#allocation11 + $0x78] sm:$0xff] %v537
    $region45: #{tpu_custom_call.1} parent=1 // pred_fallthru
      _
    // Predicated region
    $region46: #{tpu_custom_call.1} parent=1 // pred_check
      _
    $region47: #{tpu_custom_call.1} parent=1 // pred_check_branch
      %557 = sbr.rel (0) target = $region49
    $region48: #{tpu_custom_call.1} parent=1 // pred_region
      %s559 = ssub.s32 2048, 2048
      %560 = vsyncadd [#allocation5], %s559
      %s561 = sshll.u32 [#allocation11], 4
      %s562 = int_to_ptr.vmem [resolvable:$true] %s561
      %567 = dma.vmem_to_hbm [thread:$0]  %s562, 2048, %s5, [#allocation5], 128, 128, 8
    $region49: #{tpu_custom_call.1} parent=1 // pred_fallthru
      _
    // Predicated region
    $region50: #{tpu_custom_call.1} parent=1 // pred_check
      _
    $region51: #{tpu_custom_call.1} parent=1 // pred_check_branch
      %569 = sbr.rel (0) target = $region53
    $region52: #{tpu_custom_call.1} parent=1 // pred_region
      %570 = dma.done [#allocation5], 2048
    $region53: #{tpu_custom_call.1} parent=1 // pred_fallthru
      _
    %571 = vsyncpa [#allocation4], 1
    %572 = vsyncpa [#allocation7], 1
    %573 = vsyncpa [#allocation10], 1
    %574 = vsyncpa [#allocation5], 1

</llo_original>
